<compile_context>
chip_gen: v5e
topology: v5e:2x2
jax: 0.10.0
libtpu: 0.0.40
codegen_flags: <defaults>
</compile_context>

<pallas_src>
import functools

import jax
import jax.numpy as jnp
from jax.experimental import pallas as pl
from jax.experimental.pallas import tpu as pltpu


def _round_up(x, m):
    return ((x + m - 1) // m) * m


def center_loss_kernel(x_ref, labels_ref, c_ref, out_ref, acc_ref, *,
                       batch_size, num_classes, block_rows):
    # x_ref:      (TB, D) feature block for this grid step.
    # labels_ref: (TB, 1) int32 labels for this block.
    # c_ref:      (C, D) full centers table, VMEM-resident across the grid.
    # out_ref:    (1, 1) f32 scalar loss in SMEM (resident across the grid).
    # acc_ref:    (TB, 1) f32 VMEM vector accumulator.
    i = pl.program_id(0)
    n = pl.num_programs(0)

    @pl.when(i == 0)
    def _init():
        acc_ref[...] = jnp.zeros_like(acc_ref)

    x = x_ref[...].astype(jnp.float32)                          # (TB, D)
    labels = labels_ref[...]                                    # (TB, 1) int32
    centers = c_ref[...].astype(jnp.float32)                    # (C, D)

    # Exact gather of each row's center via a one-hot matmul on the MXU.
    class_ids = jax.lax.broadcasted_iota(jnp.int32, (1, num_classes), 1)
    onehot = (labels == class_ids).astype(jnp.float32)          # (TB, C)
    gathered = jnp.dot(onehot, centers,
                       preferred_element_type=jnp.float32)      # (TB, D)

    diff = x - gathered
    d = jnp.sum(diff * diff, axis=1, keepdims=True)             # (TB, 1)

    # clamp-after-mask semantics: the matched entry clamps to [1e-12, 1e12];
    # a row with no matched entry (invalid label) contributes one extra
    # clamped zero (1e-12) in its place.
    label_valid = jnp.logical_and(labels >= 0, labels < num_classes)
    per_row = jnp.where(label_valid,
                        jnp.clip(d, 1e-12, 1.0e12),
                        jnp.float32(1e-12))                     # (TB, 1)

    # Mask rows that are only batch padding.
    row_ids = i * block_rows + jax.lax.broadcasted_iota(
        jnp.int32, (block_rows, 1), 0)
    per_row = jnp.where(row_ids < batch_size, per_row, jnp.float32(0.0))

    acc_ref[...] += per_row

    @pl.when(i == n - 1)
    def _finalize():
        # Each real row additionally carries (C-1) clamped zeros of 1e-12
        # (clamp applied AFTER masking in the reference).
        extra = jnp.float32((num_classes - 1) * 1e-12)
        out_ref[0, 0] = (jnp.sum(acc_ref[...]) / jnp.float32(batch_size)
                         + extra)


def center_loss(x, centers, labels, *, block_rows=512):
    """x: (B, D) float (f32 or bf16), centers: (C, D) float, labels: (B,) int."""
    B, D = x.shape
    C, Dc = centers.shape
    assert D == Dc
    labels = labels.astype(jnp.int32)

    # Batch tile: multiple of 8 sublanes, capped by the (rounded-up) batch.
    TB = min(_round_up(block_rows, 8), _round_up(B, 8))
    B_pad = _round_up(B, TB)
    G = B_pad // TB

    if B_pad != B:
        x = jnp.pad(x, ((0, B_pad - B), (0, 0)))
        labels = jnp.pad(labels, (0, B_pad - B), constant_values=-1)
    labels2d = labels.reshape(B_pad, 1)

    # Rough VMEM estimate for the resident-centers path (table + double-
    # buffered x/label tiles + f32 temporaries + accumulator).
    est_vmem = (centers.size * centers.dtype.itemsize
                + 2 * TB * (D * x.dtype.itemsize + 4)
                + TB * 4
                + 4 * TB * (D + C + 2))
    compiler_kwargs = dict(
        # The batch axis carries the accumulator / SMEM output -> "arbitrary".
        # TODO(synk): split the batch over a leading "parallel" axis (per-core
        # partial sums reduced in the wrapper) so v7x's 2 TensorCores share it.
        dimension_semantics=("arbitrary",),
    )
    if est_vmem > 24 * 1024 * 1024:
        # TODO(synk): when the centers table does not fit VMEM (v7x has only
        # 64 MiB), chunk D on a grid axis or switch to a manual double-buffered
        # center-row gather (memory_space=pl.ANY + pltpu.make_async_copy)
        # instead of just raising the scoped limit.
        compiler_kwargs["vmem_limit_bytes"] = min(int(est_vmem * 2),
                                                  96 * 1024 * 1024)

    grid_spec = pltpu.PrefetchScalarGridSpec(
        num_scalar_prefetch=0,
        grid=(G,),
        in_specs=[
            pl.BlockSpec((TB, D), lambda i: (i, 0)),   # feature block
            pl.BlockSpec((TB, 1), lambda i: (i, 0)),   # label block
            pl.BlockSpec((C, D), lambda i: (0, 0)),    # resident centers table
        ],
        out_specs=pl.BlockSpec(memory_space=pltpu.SMEM),
        scratch_shapes=[pltpu.VMEM((TB, 1), jnp.float32)],
    )

    loss = pl.pallas_call(
        functools.partial(center_loss_kernel,
                          batch_size=B, num_classes=C, block_rows=TB),
        out_shape=jax.ShapeDtypeStruct((1, 1), jnp.float32),
        grid_spec=grid_spec,
        compiler_params=pltpu.CompilerParams(**compiler_kwargs),
    )(x, labels2d, centers)
    return {'center_loss': loss[0, 0]}


if __name__ == "__main__":
    num_classes = 10
    feat_dim = 32
    batch = 8

    key = jax.random.PRNGKey(0)
    k_x, k_c, k_l = jax.random.split(key, 3)

    # Deterministic synthetic parameters / inputs (nn.Parameter(torch.randn(C, D)))
    centers = jax.random.normal(k_c, (num_classes, feat_dim), dtype=jnp.float32)
    x = jax.random.normal(k_x, (batch, feat_dim), dtype=jnp.float32)
    labels = jax.random.randint(k_l, (batch,), 0, num_classes, dtype=jnp.int32)

    out = center_loss(x, centers, labels)
    loss = jax.block_until_ready(out['center_loss'])

    # Plain-JAX reference mirroring the torch formula (distmat, clamp after mask).
    x_sq = jnp.sum(x ** 2, axis=1, keepdims=True)
    c_sq = jnp.sum(centers ** 2, axis=1, keepdims=True).T
    distmat = x_sq + c_sq - 2.0 * (x @ centers.T)
    mask = (labels[:, None] == jnp.arange(num_classes)[None, :]).astype(jnp.float32)
    ref = jnp.sum(jnp.clip(distmat * mask, 1e-12, 1.0e12)) / batch
    assert jnp.allclose(loss, ref, rtol=1e-4, atol=1e-4), (loss, ref)

    print("KERNEL_OK")
</pallas_src>

<mosaic_0001>
module attributes {stable_mosaic.version = 11 : i64} {
  func.func @center_loss_kernel(%arg0: i32, %arg1: memref<8x32xf32, #tpu.memory_space<vmem>>, %arg2: memref<8x1xi32, #tpu.memory_space<vmem>>, %arg3: memref<10x32xf32, #tpu.memory_space<vmem>>, %arg4: memref<1x1xf32, #tpu.memory_space<smem>>, %arg5: memref<8x1xf32, #tpu.memory_space<vmem>>) attributes {dimension_semantics = [#tpu.dimension_semantics<arbitrary>], iteration_bounds = array<i64: 1>, scalar_prefetch = 0 : i64, scratch_operands = 1 : i64, tpu.core_type = #tpu.core_type<tc>, window_params = [{transform_indices = @transform_0, window_bounds = array<i64: 8, 32>}, {transform_indices = @transform_1, window_bounds = array<i64: 8, 1>}, {pipeline_mode = #tpu.pipeline_mode<synchronous>, transform_indices = @transform_2, window_bounds = array<i64: 10, 32>}, {transform_indices = @transform_3, window_bounds = array<i64: 1, 1>}]} {
    %c0_i32 = arith.constant 0 : i32
    %0 = arith.cmpi eq, %arg0, %c0_i32 : i32
    %1 = arith.extui %0 : i1 to i32
    %c0_i32_0 = arith.constant 0 : i32
    %2 = arith.cmpi ne, %1, %c0_i32_0 : i32
    scf.if %2 {
      %cst_19 = arith.constant 0.000000e+00 : f32
      %42 = vector.broadcast %cst_19 : f32 to vector<8x1xf32>
      %c0_20 = arith.constant 0 : index
      %c0_21 = arith.constant 0 : index
      %43 = vector.load %arg5[%c0_20, %c0_21] : memref<8x1xf32, #tpu.memory_space<vmem>>, vector<8x1xf32>
      tpu.vector_store %arg5[%c0_20, %c0_21], %42 {strides = array<i32>} : memref<8x1xf32, #tpu.memory_space<vmem>>, vector<8x1xf32>,
    } else {
    }
    %c0 = arith.constant 0 : index
    %c0_1 = arith.constant 0 : index
    %3 = vector.load %arg1[%c0, %c0_1] : memref<8x32xf32, #tpu.memory_space<vmem>>, vector<8x32xf32>
    %c0_2 = arith.constant 0 : index
    %c0_3 = arith.constant 0 : index
    %4 = vector.load %arg2[%c0_2, %c0_3] : memref<8x1xi32, #tpu.memory_space<vmem>>, vector<8x1xi32>
    %c0_4 = arith.constant 0 : index
    %c0_5 = arith.constant 0 : index
    %5 = vector.load %arg3[%c0_4, %c0_5] : memref<10x32xf32, #tpu.memory_space<vmem>>, vector<10x32xf32>
    %6 = tpu.iota {dimensions = array<i32: 1>} : vector<1x10xi32>
    %7 = vector.broadcast %4 : vector<8x1xi32> to vector<8x10xi32>
    %8 = vector.broadcast %6 : vector<1x10xi32> to vector<8x10xi32>
    %9 = arith.cmpi eq, %7, %8 : vector<8x10xi32>
    %10 = arith.extui %9 : vector<8x10xi1> to vector<8x10xi32>
    %11 = arith.sitofp %10 : vector<8x10xi32> to vector<8x10xf32>
    %cst = arith.constant dense<0.000000e+00> : vector<8x32xf32>
    %12 = tpu.matmul %11, %5, %cst {dimension_numbers = #tpu.dot_dimension_numbers<[1], [0], [0], [1], [0, 0, 1, 1], [], []>} : vector<8x10xf32>, vector<10x32xf32>, vector<8x32xf32> -> vector<8x32xf32>
    %13 = arith.subf %3, %12 : vector<8x32xf32>
    %14 = arith.mulf %13, %13 : vector<8x32xf32>
    %cst_6 = arith.constant dense<0.000000e+00> : vector<8xf32>
    %15 = vector.multi_reduction <add>, %14, %cst_6 [1] : vector<8x32xf32> to vector<8xf32>
    %16 = vector.shape_cast %15 : vector<8xf32> to vector<8x1xf32>
    %c0_i32_7 = arith.constant 0 : i32
    %17 = vector.broadcast %c0_i32_7 : i32 to vector<8x1xi32>
    %18 = arith.cmpi sge, %4, %17 : vector<8x1xi32>
    %c10_i32 = arith.constant 10 : i32
    %19 = vector.broadcast %c10_i32 : i32 to vector<8x1xi32>
    %20 = arith.cmpi slt, %4, %19 : vector<8x1xi32>
    %21 = arith.andi %18, %20 : vector<8x1xi1>
    %cst_8 = arith.constant 9.99999996E-13 : f32
    %cst_9 = arith.constant 9.99999995E+11 : f32
    %22 = vector.broadcast %cst_8 : f32 to vector<8x1xf32>
    %23 = arith.maximumf %22, %16 : vector<8x1xf32>
    %24 = vector.broadcast %cst_9 : f32 to vector<8x1xf32>
    %25 = arith.minimumf %24, %23 : vector<8x1xf32>
    %cst_10 = arith.constant 9.99999996E-13 : f32
    %26 = vector.broadcast %cst_10 : f32 to vector<8x1xf32>
    %27 = arith.select %21, %25, %26 : vector<8x1xi1>, vector<8x1xf32>
    %c8_i32 = arith.constant 8 : i32
    %28 = arith.muli %arg0, %c8_i32 : i32
    %29 = tpu.iota {dimensions = array<i32: 0>} : vector<8x1xi32>
    %30 = vector.broadcast %28 : i32 to vector<8x1xi32>
    %31 = arith.addi %30, %29 : vector<8x1xi32>
    %c8_i32_11 = arith.constant 8 : i32
    %32 = vector.broadcast %c8_i32_11 : i32 to vector<8x1xi32>
    %33 = arith.cmpi slt, %31, %32 : vector<8x1xi32>
    %cst_12 = arith.constant 0.000000e+00 : f32
    %34 = vector.broadcast %cst_12 : f32 to vector<8x1xf32>
    %35 = arith.select %33, %27, %34 : vector<8x1xi1>, vector<8x1xf32>
    %c0_13 = arith.constant 0 : index
    %c0_14 = arith.constant 0 : index
    %36 = vector.load %arg5[%c0_13, %c0_14] : memref<8x1xf32, #tpu.memory_space<vmem>>, vector<8x1xf32>
    %37 = arith.addf %36, %35 : vector<8x1xf32>
    %c0_15 = arith.constant 0 : index
    %c0_16 = arith.constant 0 : index
    %38 = vector.load %arg5[%c0_15, %c0_16] : memref<8x1xf32, #tpu.memory_space<vmem>>, vector<8x1xf32>
    tpu.vector_store %arg5[%c0_15, %c0_16], %37 {strides = array<i32>} : memref<8x1xf32, #tpu.memory_space<vmem>>, vector<8x1xf32>,
    %c0_i32_17 = arith.constant 0 : i32
    %39 = arith.cmpi eq, %arg0, %c0_i32_17 : i32
    %40 = arith.extui %39 : i1 to i32
    %c0_i32_18 = arith.constant 0 : i32
    %41 = arith.cmpi ne, %40, %c0_i32_18 : i32
    scf.if %41 {
      %c0_19 = arith.constant 0 : index
      %c0_20 = arith.constant 0 : index
      %42 = vector.load %arg5[%c0_19, %c0_20] : memref<8x1xf32, #tpu.memory_space<vmem>>, vector<8x1xf32>
      %43 = vector.shape_cast %42 : vector<8x1xf32> to vector<1x8x1xf32>
      %cst_21 = arith.constant dense<0.000000e+00> : vector<1xf32>
      %44 = vector.multi_reduction <add>, %43, %cst_21 [1, 2] : vector<1x8x1xf32> to vector<1xf32>
      %45 = vector.shape_cast %44 : vector<1xf32> to vector<1x1x1xf32>
      %46 = vector.extract %45[0, 0, 0] : f32 from vector<1x1x1xf32>
      %cst_22 = arith.constant 8.000000e+00 : f32
      %47 = arith.divf %46, %cst_22 : f32
      %cst_23 = arith.constant 9.000000e-12 : f32
      %48 = arith.addf %47, %cst_23 : f32
      %c0_24 = arith.constant 0 : index
      %c0_25 = arith.constant 0 : index
      %49 = memref.load %arg4[%c0_24, %c0_25] : memref<1x1xf32, #tpu.memory_space<smem>>
      memref.store %48, %arg4[%c0_24, %c0_25] : memref<1x1xf32, #tpu.memory_space<smem>>
    } else {
    }
    return
  }
  func.func @transform_0(%arg0: i32) -> (i32, i32) {
    %c0_i32 = arith.constant 0 : i32
    %c0_i32_0 = arith.constant 0 : i32
    return %arg0, %c0_i32 : i32, i32
  }
  func.func @transform_1(%arg0: i32) -> (i32, i32) {
    %c0_i32 = arith.constant 0 : i32
    %c0_i32_0 = arith.constant 0 : i32
    return %arg0, %c0_i32 : i32, i32
  }
  func.func @transform_2(%arg0: i32) -> (i32, i32) {
    %c0_i32 = arith.constant 0 : i32
    %c0_i32_0 = arith.constant 0 : i32
    %c0_i32_1 = arith.constant 0 : i32
    return %c0_i32, %c0_i32_0 : i32, i32
  }
  func.func @transform_3(%arg0: i32) -> (i32, i32) {
    %c0_i32 = arith.constant 0 : i32
    %c0_i32_0 = arith.constant 0 : i32
    %c0_i32_1 = arith.constant 0 : i32
    return %c0_i32, %c0_i32_0 : i32, i32
  }
}

</mosaic_0001>

<llo_original>
// kernel: tpu_custom_call.1
$region0: #{tpu_custom_call.1}
  #allocation0 [shape = 'u32[]', space=smem, size = 0x4, offset = 0x4, fixed_abs, tag = 'smem constant byte address 0x4 - core index']
  #allocation1 [shape = 'u32[72,128]{1,0:T(1,128)}', space=vmem, size = 0x9000, scoped, tag = 'internal scratch']
  #allocation2 [shape = 'f32[8,1]{1,0:T(8,128)}', space=vmem, size = 0x1000, scoped, tag = 'scratch operand']
  %s0 = inlined_call_operand.vmem [shape: f32[8,32], index: 0, kind: input, shape index: {}]
  %s1 = inlined_call_operand.vmem [shape: s32[8,1], index: 1, kind: input, shape index: {}]
  %s2 = inlined_call_operand.hbm [shape: f32[10,32], index: 2, kind: input, shape index: {}]
  %s3 = inlined_call_operand.hbm [shape: f32[1,1], index: 3, kind: output, shape index: {}]
  %s4 = sld [smem:[#allocation0]]
  $region34: #{tpu_custom_call.1} parent=0
    _
  %s6 = ssub.s32 1, %s4
  %s7 = scalar_select 0, %s6, %s4
  $region1: #{tpu_custom_call.1} parent=0
    #allocation3 [shape = 'u8[8192]{0}', space=vmem, size = 0x2000, scoped, tag = 'input window, operand 2, single buffered']
    #allocation4 [shape = 's32[1]{0}', space=sflag, size = 0x4, scoped, tag = 'scoped memory for tpu_custom_call.1']
    #allocation5 [shape = 's32[1]{0}', space=sflag, size = 0x4, scoped, tag = 'scoped memory for tpu_custom_call.1']
    #allocation6 [shape = 'u8[512]{0}', space=smem, size = 0x200, scoped, tag = 'output window, operand 0, single buffered']
    %8 = vsyncpa [#allocation4], 0
    %9 = vsyncpa [#allocation5], 0
    // Predicated region
    $region2: #{tpu_custom_call.1} parent=1 // pred_check
      _
    $region3: #{tpu_custom_call.1} parent=1 // pred_check_branch
      %11 = sbr.rel (0) target = $region5
    $region4: #{tpu_custom_call.1} parent=1 // pred_region
      _
    $region5: #{tpu_custom_call.1} parent=1 // pred_fallthru
      _
    // Predicated region
    $region6: #{tpu_custom_call.1} parent=1 // pred_check
      _
    $region7: #{tpu_custom_call.1} parent=1 // pred_check_branch
      %13 = sbr.rel (0) target = $region9
    $region8: #{tpu_custom_call.1} parent=1 // pred_region
      _
    $region9: #{tpu_custom_call.1} parent=1 // pred_fallthru
      _
    // Predicated region
    $region10: #{tpu_custom_call.1} parent=1 // pred_check
      _
    $region11: #{tpu_custom_call.1} parent=1 // pred_check_branch
      %15 = sbr.rel (0) target = $region13
    $region12: #{tpu_custom_call.1} parent=1 // pred_region
      %17 = vsyncadd [#allocation4], 0
      %s18 = sshll.u32 %s2, 4
      %s19 = int_to_ptr.hbm [resolvable:$true] %s18
      %s20 = sshll.u32 [#allocation3], 4
      %s21 = int_to_ptr.vmem [resolvable:$true] %s20
      %26 = dma.hbm_to_vmem [thread:$0]  %s19, 256, %s21, [#allocation4], 128, 128, 8
    $region13: #{tpu_custom_call.1} parent=1 // pred_fallthru
      _
    // Predicated region
    $region14: #{tpu_custom_call.1} parent=1 // pred_check
      _
    $region15: #{tpu_custom_call.1} parent=1 // pred_check_branch
      %28 = sbr.rel (0) target = $region17
    $region16: #{tpu_custom_call.1} parent=1 // pred_region
      %30 = dma.done [#allocation4], 256
    $region17: #{tpu_custom_call.1} parent=1 // pred_fallthru
      _
    %p31 = scmp.eq.s32.totalorder 0, 0
    // Predicated region
    $region18: #{tpu_custom_call.1} parent=1 // pred_check
      %p32 = pneg %p31
    $region19: #{tpu_custom_call.1} parent=1 // pred_check_branch
      %34 = sbr.rel (%p32) target = $region21
    $region20: #{tpu_custom_call.1} parent=1 // pred_region
      %vm35 = vcmask 7168
      %36 = vst.msk [vmem:[#allocation2] sm:$0xff] %vm35, 0.0
    $region21: #{tpu_custom_call.1} parent=1 // pred_fallthru
      _
    %v37 = vld [vmem:[%s0] sm:$0xff]
    %v38 = vld [vmem:[%s1] sm:$0xff]
    %v39 = vld [vmem:[#allocation3] sm:$0xff]
    %v40 = vld [vmem:[#allocation3 + $0x8] sm:$0x3]
    %v41 = vlaneseq
    %v42 = vand.u32 %v41, 127
    %43 = vset.pattern.permute.xlu0 0
    %44 = vperm.xlu0 %43, %v38
    %v45 = vpop.permute.xlu0 %44
    %vm46 = vcmp.eq.s32.totalorder %v45, %v42
    %v47 = vsel %vm46, 1, 0
    %v48 = vcvt.s32.f32 %v47
    %vm49 = vcmask 80896
    %v51 = vsel %vm49, %v48, 0
    %vm53 = vcmask 1041408
    %v55 = vsel %vm53, %v40, 0
    %57 = vmatpush.msra.mxu0 0.0
    %58 = vmatpush.msra.mxu0 0.0
    %59 = vmatpush.msra.mxu0 0.0
    %60 = vmatpush.msra.mxu0 0.0
    %61 = vmatpush.msra.mxu0 0.0
    %62 = vmatpush.msra.mxu0 0.0
    %63 = vmatpush.msra.mxu0 0.0
    %64 = vmatpush.msra.mxu0 0.0
    %65 = vmatpush.msra.mxu0 0.0
    %66 = vmatpush.msra.mxu0 0.0
    %67 = vmatpush.msra.mxu0 0.0
    %68 = vmatpush.msra.mxu0 0.0
    %69 = vmatpush.msra.mxu0 0.0
    %70 = vmatpush.msra.mxu0 0.0
    %71 = vmatpush.msra.mxu0 %v55
    %72 = vmatpush.msra.mxu0 %v39
    %73 = vmatmul.f32.gmra.mxu0 %v51
    %v74 = vpop.f32.mrf.mxu0
    %v75 = vadd.f32 0.0, %v74
    %76 = vdwg.mxu0
    %v77 = vsub.f32 %v37, %v75
    %v78 = vmul.f32 %v77, %v77
    %vm79 = vcmask 261120
    %v80 = vsel %vm79, %v78, 0.0
    %81 = vadd.xlane.f32.xlu0 %v80
    %v82 = vpop.xlane.xlu0 %81
    %vm83 = vcmp.ge.s32.totalorder %v38, 0
    %vm84 = vcmp.lt.s32.totalorder %v38, 10
    %vm85 = vmand %vm83, %vm84
    %v86 = vmax.f32 %v82, 1e-12
    %v87 = vmin.f32 %v86, 1e+12
    %v88 = vsel %vm85, %v87, 1e-12
    %s89 = smul.u32 0, 8
    %v90 = vlaneseq
    %v91 = vshrl.u32 %v90, 7
    %v92 = vstv %s89
    %v93 = vadd.s32 %v92, %v91
    %vm94 = vcmp.lt.s32.totalorder %v93, 8
    %v95 = vsel %vm94, %v88, 0.0
    %v96 = vld [vmem:[#allocation2] sm:$0xff]
    %v97 = vadd.f32 %v96, %v95
    %vm98 = vcmask 7168
    %99 = vst.msk [vmem:[#allocation2] sm:$0xff] %vm98, %v97
    // Predicated region
    $region22: #{tpu_custom_call.1} parent=1 // pred_check
      %p100 = pneg %p31
    $region23: #{tpu_custom_call.1} parent=1 // pred_check_branch
      %102 = sbr.rel (%p100) target = $region25
    $region24: #{tpu_custom_call.1} parent=1 // pred_region
      %v103 = vld [vmem:[#allocation2] sm:$0xff]
      %v104 = vsel %vm98, %v103, 0.0
      %105 = vadd.xlane.f32.xlu0 %v104
      %v106 = vpop.xlane.xlu0 %105
      %v107 = vrot.slane %v106, 4
      %v108 = vadd.f32 %v106, %v107
      %v109 = vrot.slane %v108, 2
      %v110 = vadd.f32 %v108, %v109
      %v111 = vrot.slane %v110, 1
      %v112 = vadd.f32 %v110, %v111
      %s113 = vtos %v112
      %v114 = vrcp.pop 8.0
      %v115 = vmul.f32 8.0, %v114
      %v116 = vsub.f32 1.0, %v115
      %v117 = vmul.f32 %v114, %v116
      %v118 = vadd.f32 %v114, %v117
      %vm119 = vweird.f32 %v114
      %v120 = vsel %vm119, %v114, %v118
      %s121 = vtos %v120
      %s122 = smul.f32 %s113, %s121
      %s123 = sadd.f32 %s122, 9e-12
      %s124 = scalar_lea.smem [#allocation6], 0
      %125 = sst [smem:[%s124]] %s123
    $region25: #{tpu_custom_call.1} parent=1 // pred_fallthru
      _
    // Predicated region
    $region26: #{tpu_custom_call.1} parent=1 // pred_check
      _
    $region27: #{tpu_custom_call.1} parent=1 // pred_check_branch
      %127 = sbr.rel (0) target = $region29
    $region28: #{tpu_custom_call.1} parent=1 // pred_region
      %129 = vsyncadd [#allocation5], 0
      %s131 = sshll.u32 %s3, 4
      %s132 = int_to_ptr.hbm [resolvable:$true] %s131
      %134 = dma.smem_to_hbm [#allocation6], 16, %s132, [#allocation5]
    $region29: #{tpu_custom_call.1} parent=1 // pred_fallthru
      _
    // Predicated region
    $region30: #{tpu_custom_call.1} parent=1 // pred_check
      _
    $region31: #{tpu_custom_call.1} parent=1 // pred_check_branch
      %136 = sbr.rel (0) target = $region33
    $region32: #{tpu_custom_call.1} parent=1 // pred_region
      %138 = dma.done [#allocation5], 16
    $region33: #{tpu_custom_call.1} parent=1 // pred_fallthru
      _
    %139 = sfence
    %140 = vsyncpa [#allocation4], 1
    %141 = vsyncpa [#allocation5], 1

</llo_original>
